<compile_context>
chip_gen: v7x
topology: tpu7x:2x2x1
jax: 0.10.0
libtpu: 0.0.40
codegen_flags: <defaults>
</compile_context>

<pallas_src>
import functools

import jax
import jax.numpy as jnp
from jax.experimental import pallas as pl
from jax.experimental.pallas import tpu as pltpu

_MIB = 1024 * 1024


# ---------------------------------------------------------------------------
# Hardware-aware sizing helpers
# ---------------------------------------------------------------------------
def _vmem_cap_bytes():
    """Approximate physical VMEM per TensorCore for the local chip."""
    kind = ""
    try:
        kind = jax.devices()[0].device_kind.lower()
    except Exception:
        pass
    if any(tag in kind for tag in ("v4", "v5", "v6")):
        return 128 * _MIB
    if any(tag in kind for tag in ("v2", "v3")):
        return 16 * _MIB
    return 64 * _MIB          # v7x (and unknown): be conservative


def _layer_flops(n, f_in, f_out):
    # N^2 matmul contracts over min(F_in, F_out) thanks to reassociation.
    return 2.0 * n * n * min(f_in, f_out) + 4.0 * n * f_in * f_out


# ---------------------------------------------------------------------------
# Shared in-kernel math (all MXU ops bf16 x bf16 -> f32 accumulate)
# ---------------------------------------------------------------------------
def _graph_conv_math(adj, h_bf16, w_root, w_rel, b, *, apply_relu):
    f_in, f_out = w_rel.shape
    root = jnp.dot(h_bf16, w_root, preferred_element_type=jnp.float32)
    if f_in <= f_out:
        # Contract the N^2 matmul over the smaller F_in, then apply W_rel.
        agg = jnp.dot(adj, h_bf16, preferred_element_type=jnp.float32)
        rel = jnp.dot(agg.astype(jnp.bfloat16), w_rel,
                      preferred_element_type=jnp.float32)
    else:
        # Shrink first so the N^2 matmul contracts over F_out.
        hw = jnp.dot(h_bf16, w_rel, preferred_element_type=jnp.float32)
        rel = jnp.dot(adj, hw.astype(jnp.bfloat16),
                      preferred_element_type=jnp.float32)
    z = root + rel + b
    if apply_relu:
        z = jnp.maximum(z, 0.0)
    return z


# ---------------------------------------------------------------------------
# Fused 3-layer kernel (adjacency loaded from HBM exactly once)
# ---------------------------------------------------------------------------
def _gnn_fused_kernel(adj_ref, x_ref,
                      w1r_ref, w1n_ref, b1_ref,
                      w2r_ref, w2n_ref, b2_ref,
                      w3r_ref, w3n_ref, b3_ref,
                      out_ref):
    adj = adj_ref[...]                                   # (N, N) bf16, read once
    h1 = _graph_conv_math(adj, x_ref[...], w1r_ref[...], w1n_ref[...],
                          b1_ref[...], apply_relu=True).astype(jnp.bfloat16)
    h2 = _graph_conv_math(adj, h1, w2r_ref[...], w2n_ref[...],
                          b2_ref[...], apply_relu=True).astype(jnp.bfloat16)
    out_ref[...] = _graph_conv_math(adj, h2, w3r_ref[...], w3n_ref[...],
                                    b3_ref[...], apply_relu=False)


def _gnn_forward_fused(adj_bf16, x_bf16, wb, biases, vmem_cap):
    n, f_in = x_bf16.shape
    f_h = wb["w1_rel"].shape[1]
    f_out = wb["w3_rel"].shape[1]

    args = (adj_bf16, x_bf16,
            wb["w1_root"], wb["w1_rel"], biases["b1"],
            wb["w2_root"], wb["w2_rel"], biases["b2"],
            wb["w3_root"], wb["w3_rel"], biases["b3"])
    in_specs = [pl.BlockSpec(a.shape, lambda i: (0, 0)) for a in args]

    flops = (_layer_flops(n, f_in, f_h) + _layer_flops(n, f_h, f_h)
             + _layer_flops(n, f_h, f_out))
    bytes_accessed = (n * n * 2 + n * f_in * 2 + n * f_out * 4
                      + sum(int(w.size) * 2 for w in wb.values())
                      + sum(int(b.size) * 4 for b in biases.values()))
    # Resident-VMEM estimate: adjacency + a few f32 activation temporaries.
    needed = (n * n * 2 + n * f_in * 2 + n * f_out * 4
              + 6 * n * max(f_h, f_out) * 4 + 64 * 1024)
    vmem_limit = int(min(vmem_cap, max(32 * _MIB, 2 * needed)))

    return pl.pallas_call(
        _gnn_fused_kernel,
        out_shape=jax.ShapeDtypeStruct((n, f_out), jnp.float32),
        grid=(1,),
        in_specs=in_specs,
        out_specs=pl.BlockSpec((n, f_out), lambda i: (0, 0)),
        compiler_params=pltpu.CompilerParams(
            dimension_semantics=("arbitrary",),
            vmem_limit_bytes=vmem_limit),
        cost_estimate=pl.CostEstimate(flops=int(flops), transcendentals=0,
                                      bytes_accessed=int(bytes_accessed)),
    )(*args)


# ---------------------------------------------------------------------------
# Large-N fallback: per-layer row-tiled kernels (adjacency streamed once/layer)
# ---------------------------------------------------------------------------
def _conv_row_tile_agg_first_kernel(adj_ref, h_full_ref, h_tile_ref,
                                    w_root_ref, w_rel_ref, b_ref, out_ref,
                                    *, apply_relu):
    """out_tile = h_tile @ W_root + (adj_tile @ h) @ W_rel + b   (F_in <= F_out)."""
    agg = jnp.dot(adj_ref[...], h_full_ref[...],
                  preferred_element_type=jnp.float32)                 # (TM, F_in)
    z = (jnp.dot(h_tile_ref[...], w_root_ref[...],
                 preferred_element_type=jnp.float32)
         + jnp.dot(agg.astype(jnp.bfloat16), w_rel_ref[...],
                   preferred_element_type=jnp.float32)
         + b_ref[...])
    if apply_relu:
        z = jnp.maximum(z, 0.0)
    out_ref[...] = z.astype(out_ref.dtype)


def _conv_row_tile_pre_transformed_kernel(adj_ref, hw_ref, h_tile_ref,
                                          w_root_ref, b_ref, out_ref,
                                          *, apply_relu):
    """out_tile = h_tile @ W_root + adj_tile @ (h @ W_rel) + b   (F_out < F_in).

    h @ W_rel is computed once in the wrapper (tiny matmul), so the N^2 matmul
    contracts over F_out and is never recomputed per row tile.
    """
    z = (jnp.dot(h_tile_ref[...], w_root_ref[...],
                 preferred_element_type=jnp.float32)
         + jnp.dot(adj_ref[...], hw_ref[...],
                   preferred_element_type=jnp.float32)
         + b_ref[...])
    if apply_relu:
        z = jnp.maximum(z, 0.0)
    out_ref[...] = z.astype(out_ref.dtype)


def _pick_tile_m(n, f_in, f_out, tile_m, vmem_cap):
    tm = min(tile_m, n)
    if n >= 32 and tm > n // 2:          # >= 2 row tiles so both v7x cores work
        tm = n // 2
    tm = max(16, (tm // 16) * 16)        # bf16 sublane packing: multiple of 16

    def footprint(t):
        f_big = max(f_in, f_out)
        return (2 * t * n * 2            # double-buffered bf16 adjacency tiles
                + 2 * n * f_big * 2      # resident h / hw
                + 2 * t * f_in * 2       # streamed h row tiles
                + 2 * t * f_out * 4      # output tiles
                + 4 * f_in * f_out * 2 + f_out * 4)

    while tm > 16 and footprint(tm) > 0.6 * vmem_cap:
        tm -= 16
    return tm, footprint(tm)


def _graph_conv_row_tiled(adj_bf16, h_bf16, w_root, w_rel, b, *, apply_relu,
                          out_dtype, tile_m, vmem_cap):
    n, f_in = h_bf16.shape
    f_out = w_rel.shape[1]
    tm, fp = _pick_tile_m(n, f_in, f_out, tile_m, vmem_cap)
    grid = (pl.cdiv(n, tm),)

    adj_spec = pl.BlockSpec((tm, n), lambda i: (i, 0))        # streamed row tiles
    h_tile_spec = pl.BlockSpec((tm, f_in), lambda i: (i, 0))
    b_spec = pl.BlockSpec((1, f_out), lambda i: (0, 0))
    out_spec = pl.BlockSpec((tm, f_out), lambda i: (i, 0))

    def w_full(w):
        return pl.BlockSpec(w.shape, lambda i: (0, 0))

    if f_in <= f_out:
        kernel = functools.partial(_conv_row_tile_agg_first_kernel,
                                   apply_relu=apply_relu)
        in_specs = [adj_spec, pl.BlockSpec((n, f_in), lambda i: (0, 0)),
                    h_tile_spec, w_full(w_root), w_full(w_rel), b_spec]
        args = (adj_bf16, h_bf16, h_bf16, w_root, w_rel, b)
    else:
        hw = jnp.dot(h_bf16, w_rel,
                     preferred_element_type=jnp.float32).astype(jnp.bfloat16)
        kernel = functools.partial(_conv_row_tile_pre_transformed_kernel,
                                   apply_relu=apply_relu)
        in_specs = [adj_spec, pl.BlockSpec((n, f_out), lambda i: (0, 0)),
                    h_tile_spec, w_full(w_root), b_spec]
        args = (adj_bf16, hw, h_bf16, w_root, b)

    out_bytes = 2 if out_dtype == jnp.bfloat16 else 4
    bytes_accessed = (n * n * 2 + 2 * n * f_in * 2 + n * f_out * out_bytes
                      + 2 * f_in * f_out * 2 + f_out * 4)
    vmem_limit = int(min(vmem_cap, max(32 * _MIB, 2 * fp)))

    return pl.pallas_call(
        kernel,
        out_shape=jax.ShapeDtypeStruct((n, f_out), out_dtype),
        grid=grid,
        in_specs=in_specs,
        out_specs=out_spec,
        compiler_params=pltpu.CompilerParams(
            dimension_semantics=("parallel",),      # independent row tiles
            vmem_limit_bytes=vmem_limit),
        cost_estimate=pl.CostEstimate(flops=int(_layer_flops(n, f_in, f_out)),
                                      transcendentals=0,
                                      bytes_accessed=int(bytes_accessed)),
    )(*args)


# ---------------------------------------------------------------------------
# Full forward (dispatch: fused single-call vs per-layer tiled)
# ---------------------------------------------------------------------------
def gnn_forward(adj_bf16, x, params, *, tile_m=None, force_tiled=False):
    n = adj_bf16.shape[0]
    f_in = x.shape[1]
    f_h = params["w1_rel"].shape[1]
    f_out = params["w3_rel"].shape[1]
    vmem_cap = _vmem_cap_bytes()
    if tile_m is None:
        tile_m = 1024 if vmem_cap >= 128 * _MIB else 512

    x_bf16 = x.astype(jnp.bfloat16)
    wb = {k: v.astype(jnp.bfloat16) for k, v in params.items()
          if k.startswith("w")}
    biases = {k: v for k, v in params.items() if k.startswith("b")}

    fused_need = (n * n * 2 + n * f_in * 2 + n * f_out * 4
                  + 6 * n * max(f_h, f_out) * 4)
    if (not force_tiled) and fused_need <= 0.5 * vmem_cap:
        return _gnn_forward_fused(adj_bf16, x_bf16, wb, biases, vmem_cap)

    h1 = _graph_conv_row_tiled(adj_bf16, x_bf16, wb["w1_root"], wb["w1_rel"],
                               biases["b1"], apply_relu=True,
                               out_dtype=jnp.bfloat16, tile_m=tile_m,
                               vmem_cap=vmem_cap)
    h2 = _graph_conv_row_tiled(adj_bf16, h1, wb["w2_root"], wb["w2_rel"],
                               biases["b2"], apply_relu=True,
                               out_dtype=jnp.bfloat16, tile_m=tile_m,
                               vmem_cap=vmem_cap)
    return _graph_conv_row_tiled(adj_bf16, h2, wb["w3_root"], wb["w3_rel"],
                                 biases["b3"], apply_relu=False,
                                 out_dtype=jnp.float32, tile_m=tile_m,
                                 vmem_cap=vmem_cap)


# ---------------------------------------------------------------------------
# Graph construction / params / reference
# ---------------------------------------------------------------------------
def build_adjacency(distance_matrix, threshold=700.0, dtype=jnp.bfloat16):
    """Dense equivalent of build_edge_index: edge iff dist < threshold, no self loops."""
    n = distance_matrix.shape[0]
    adj = jnp.where(distance_matrix < threshold, 1.0, 0.0)
    adj = adj * (1.0 - jnp.eye(n, dtype=adj.dtype))
    return adj.astype(dtype)          # 0/1 is exact in bf16


def init_params(key, in_dim, hidden_dim, out_dim):
    ks = jax.random.split(key, 9)

    def lin(k, fan_in, fan_out):
        scale = 1.0 / jnp.sqrt(jnp.float32(fan_in))
        return jax.random.uniform(k, (fan_in, fan_out), jnp.float32,
                                  -scale, scale)

    def bias(k, fan_in, fan_out):
        scale = 1.0 / jnp.sqrt(jnp.float32(fan_in))
        return jax.random.uniform(k, (1, fan_out), jnp.float32, -scale, scale)

    return {
        "w1_root": lin(ks[0], in_dim, hidden_dim),
        "w1_rel":  lin(ks[1], in_dim, hidden_dim),
        "b1":      bias(ks[2], in_dim, hidden_dim),
        "w2_root": lin(ks[3], hidden_dim, hidden_dim),
        "w2_rel":  lin(ks[4], hidden_dim, hidden_dim),
        "b2":      bias(ks[5], hidden_dim, hidden_dim),
        "w3_root": lin(ks[6], hidden_dim, out_dim),
        "w3_rel":  lin(ks[7], hidden_dim, out_dim),
        "b3":      bias(ks[8], hidden_dim, out_dim),
    }


def reference_forward(adj_f32, x, p):
    def conv(h, wr, wn, b):
        return adj_f32 @ h @ wn + h @ wr + b
    h1 = jnp.maximum(conv(x, p["w1_root"], p["w1_rel"], p["b1"]), 0.0)
    h2 = jnp.maximum(conv(h1, p["w2_root"], p["w2_rel"], p["b2"]), 0.0)
    return conv(h2, p["w3_root"], p["w3_rel"], p["b3"])


# ---------------------------------------------------------------------------
if __name__ == "__main__":
    n_sensors, in_dim, hidden_dim, out_dim = 48, 4, 32, 8

    key = jax.random.PRNGKey(0)
    k_dist, k_feat, k_params = jax.random.split(key, 3)

    # Deterministic synthetic "distance matrix" (symmetric, zero diagonal).
    d = jax.random.uniform(k_dist, (n_sensors, n_sensors), jnp.float32,
                           0.0, 1500.0)
    distance_matrix = (d + d.T) * 0.5
    distance_matrix = distance_matrix * (1.0 - jnp.eye(n_sensors))

    adj_f32 = build_adjacency(distance_matrix, threshold=700.0,
                              dtype=jnp.float32)
    adj_bf16 = adj_f32.astype(jnp.bfloat16)      # exact 0/1

    sensor_features = jax.random.normal(k_feat, (n_sensors, in_dim),
                                        jnp.float32)
    params = init_params(k_params, in_dim, hidden_dim, out_dim)

    # Primary path: fully fused 3-layer kernel (adjacency read once).
    fwd_fused = jax.jit(gnn_forward)
    out_fused = fwd_fused(adj_bf16, sensor_features, params)
    jax.block_until_ready(out_fused)

    # Also exercise the large-N fallback (row-tiled, 3 tiles) for coverage.
    fwd_tiled = jax.jit(functools.partial(gnn_forward, force_tiled=True,
                                          tile_m=16))
    out_tiled = fwd_tiled(adj_bf16, sensor_features, params)
    jax.block_until_ready(out_tiled)

    ref = reference_forward(adj_f32, sensor_features, params)
    for out in (out_fused, out_tiled):
        assert out.shape == (n_sensors, out_dim)
        rel_err = float(jnp.max(jnp.abs(out - ref)) /
                        (jnp.max(jnp.abs(ref)) + 1e-6))
        # bf16 operands (adjacency / activations / weights) with f32
        # accumulation vs a full-f32 reference.
        assert rel_err < 3e-2, f"relative error too large: {rel_err}"

    print("KERNEL_OK")
</pallas_src>

<mosaic_0001>
module attributes {stable_mosaic.version = 11 : i64} {
  func.func @_gnn_fused_kernel(%arg0: i32, %arg1: memref<48x48xbf16, #tpu.memory_space<vmem>>, %arg2: memref<48x4xbf16, #tpu.memory_space<vmem>>, %arg3: memref<4x32xbf16, #tpu.memory_space<vmem>>, %arg4: memref<4x32xbf16, #tpu.memory_space<vmem>>, %arg5: memref<1x32xf32, #tpu.memory_space<vmem>>, %arg6: memref<32x32xbf16, #tpu.memory_space<vmem>>, %arg7: memref<32x32xbf16, #tpu.memory_space<vmem>>, %arg8: memref<1x32xf32, #tpu.memory_space<vmem>>, %arg9: memref<32x8xbf16, #tpu.memory_space<vmem>>, %arg10: memref<32x8xbf16, #tpu.memory_space<vmem>>, %arg11: memref<1x8xf32, #tpu.memory_space<vmem>>, %arg12: memref<48x8xf32, #tpu.memory_space<vmem>>) attributes {dimension_semantics = [#tpu.dimension_semantics<arbitrary>], iteration_bounds = array<i64: 1>, scalar_prefetch = 0 : i64, scratch_operands = 0 : i64, tpu.core_type = #tpu.core_type<tc>, window_params = [{pipeline_mode = #tpu.pipeline_mode<synchronous>, transform_indices = @transform_0, window_bounds = array<i64: 48, 48>}, {pipeline_mode = #tpu.pipeline_mode<synchronous>, transform_indices = @transform_1, window_bounds = array<i64: 48, 4>}, {pipeline_mode = #tpu.pipeline_mode<synchronous>, transform_indices = @transform_2, window_bounds = array<i64: 4, 32>}, {pipeline_mode = #tpu.pipeline_mode<synchronous>, transform_indices = @transform_3, window_bounds = array<i64: 4, 32>}, {pipeline_mode = #tpu.pipeline_mode<synchronous>, transform_indices = @transform_4, window_bounds = array<i64: 1, 32>}, {pipeline_mode = #tpu.pipeline_mode<synchronous>, transform_indices = @transform_5, window_bounds = array<i64: 32, 32>}, {pipeline_mode = #tpu.pipeline_mode<synchronous>, transform_indices = @transform_6, window_bounds = array<i64: 32, 32>}, {pipeline_mode = #tpu.pipeline_mode<synchronous>, transform_indices = @transform_7, window_bounds = array<i64: 1, 32>}, {pipeline_mode = #tpu.pipeline_mode<synchronous>, transform_indices = @transform_8, window_bounds = array<i64: 32, 8>}, {pipeline_mode = #tpu.pipeline_mode<synchronous>, transform_indices = @transform_9, window_bounds = array<i64: 32, 8>}, {pipeline_mode = #tpu.pipeline_mode<synchronous>, transform_indices = @transform_10, window_bounds = array<i64: 1, 8>}, {pipeline_mode = #tpu.pipeline_mode<synchronous>, transform_indices = @transform_11, window_bounds = array<i64: 48, 8>}]} {
    %c0 = arith.constant 0 : index
    %c0_0 = arith.constant 0 : index
    %0 = vector.load %arg1[%c0, %c0_0] : memref<48x48xbf16, #tpu.memory_space<vmem>>, vector<48x48xbf16>
    %c0_1 = arith.constant 0 : index
    %c0_2 = arith.constant 0 : index
    %1 = vector.load %arg2[%c0_1, %c0_2] : memref<48x4xbf16, #tpu.memory_space<vmem>>, vector<48x4xbf16>
    %c0_3 = arith.constant 0 : index
    %c0_4 = arith.constant 0 : index
    %2 = vector.load %arg3[%c0_3, %c0_4] : memref<4x32xbf16, #tpu.memory_space<vmem>>, vector<4x32xbf16>
    %c0_5 = arith.constant 0 : index
    %c0_6 = arith.constant 0 : index
    %3 = vector.load %arg4[%c0_5, %c0_6] : memref<4x32xbf16, #tpu.memory_space<vmem>>, vector<4x32xbf16>
    %c0_7 = arith.constant 0 : index
    %c0_8 = arith.constant 0 : index
    %4 = vector.load %arg5[%c0_7, %c0_8] : memref<1x32xf32, #tpu.memory_space<vmem>>, vector<1x32xf32>
    %cst = arith.constant dense<0.000000e+00> : vector<48x32xf32>
    %5 = tpu.matmul %1, %2, %cst {dimension_numbers = #tpu.dot_dimension_numbers<[1], [0], [0], [1], [0, 0, 1, 1], [], []>} : vector<48x4xbf16>, vector<4x32xbf16>, vector<48x32xf32> -> vector<48x32xf32>
    %cst_9 = arith.constant dense<0.000000e+00> : vector<48x4xf32>
    %6 = tpu.matmul %0, %1, %cst_9 {dimension_numbers = #tpu.dot_dimension_numbers<[1], [0], [0], [1], [0, 0, 1, 1], [], []>} : vector<48x48xbf16>, vector<48x4xbf16>, vector<48x4xf32> -> vector<48x4xf32>
    %7 = arith.truncf %6 : vector<48x4xf32> to vector<48x4xbf16>
    %cst_10 = arith.constant dense<0.000000e+00> : vector<48x32xf32>
    %8 = tpu.matmul %7, %3, %cst_10 {dimension_numbers = #tpu.dot_dimension_numbers<[1], [0], [0], [1], [0, 0, 1, 1], [], []>} : vector<48x4xbf16>, vector<4x32xbf16>, vector<48x32xf32> -> vector<48x32xf32>
    %9 = arith.addf %5, %8 : vector<48x32xf32>
    %10 = vector.broadcast %4 : vector<1x32xf32> to vector<48x32xf32>
    %11 = arith.addf %9, %10 : vector<48x32xf32>
    %cst_11 = arith.constant 0.000000e+00 : f32
    %12 = vector.broadcast %cst_11 : f32 to vector<48x32xf32>
    %13 = arith.maximumf %11, %12 : vector<48x32xf32>
    %14 = arith.truncf %13 : vector<48x32xf32> to vector<48x32xbf16>
    %c0_12 = arith.constant 0 : index
    %c0_13 = arith.constant 0 : index
    %15 = vector.load %arg6[%c0_12, %c0_13] : memref<32x32xbf16, #tpu.memory_space<vmem>>, vector<32x32xbf16>
    %c0_14 = arith.constant 0 : index
    %c0_15 = arith.constant 0 : index
    %16 = vector.load %arg7[%c0_14, %c0_15] : memref<32x32xbf16, #tpu.memory_space<vmem>>, vector<32x32xbf16>
    %c0_16 = arith.constant 0 : index
    %c0_17 = arith.constant 0 : index
    %17 = vector.load %arg8[%c0_16, %c0_17] : memref<1x32xf32, #tpu.memory_space<vmem>>, vector<1x32xf32>
    %cst_18 = arith.constant dense<0.000000e+00> : vector<48x32xf32>
    %18 = tpu.matmul %14, %15, %cst_18 {dimension_numbers = #tpu.dot_dimension_numbers<[1], [0], [0], [1], [0, 0, 1, 1], [], []>} : vector<48x32xbf16>, vector<32x32xbf16>, vector<48x32xf32> -> vector<48x32xf32>
    %cst_19 = arith.constant dense<0.000000e+00> : vector<48x32xf32>
    %19 = tpu.matmul %0, %14, %cst_19 {dimension_numbers = #tpu.dot_dimension_numbers<[1], [0], [0], [1], [0, 0, 1, 1], [], []>} : vector<48x48xbf16>, vector<48x32xbf16>, vector<48x32xf32> -> vector<48x32xf32>
    %20 = arith.truncf %19 : vector<48x32xf32> to vector<48x32xbf16>
    %cst_20 = arith.constant dense<0.000000e+00> : vector<48x32xf32>
    %21 = tpu.matmul %20, %16, %cst_20 {dimension_numbers = #tpu.dot_dimension_numbers<[1], [0], [0], [1], [0, 0, 1, 1], [], []>} : vector<48x32xbf16>, vector<32x32xbf16>, vector<48x32xf32> -> vector<48x32xf32>
    %22 = arith.addf %18, %21 : vector<48x32xf32>
    %23 = vector.broadcast %17 : vector<1x32xf32> to vector<48x32xf32>
    %24 = arith.addf %22, %23 : vector<48x32xf32>
    %cst_21 = arith.constant 0.000000e+00 : f32
    %25 = vector.broadcast %cst_21 : f32 to vector<48x32xf32>
    %26 = arith.maximumf %24, %25 : vector<48x32xf32>
    %27 = arith.truncf %26 : vector<48x32xf32> to vector<48x32xbf16>
    %c0_22 = arith.constant 0 : index
    %c0_23 = arith.constant 0 : index
    %28 = vector.load %arg9[%c0_22, %c0_23] : memref<32x8xbf16, #tpu.memory_space<vmem>>, vector<32x8xbf16>
    %c0_24 = arith.constant 0 : index
    %c0_25 = arith.constant 0 : index
    %29 = vector.load %arg10[%c0_24, %c0_25] : memref<32x8xbf16, #tpu.memory_space<vmem>>, vector<32x8xbf16>
    %c0_26 = arith.constant 0 : index
    %c0_27 = arith.constant 0 : index
    %30 = vector.load %arg11[%c0_26, %c0_27] : memref<1x8xf32, #tpu.memory_space<vmem>>, vector<1x8xf32>
    %cst_28 = arith.constant dense<0.000000e+00> : vector<48x8xf32>
    %31 = tpu.matmul %27, %28, %cst_28 {dimension_numbers = #tpu.dot_dimension_numbers<[1], [0], [0], [1], [0, 0, 1, 1], [], []>} : vector<48x32xbf16>, vector<32x8xbf16>, vector<48x8xf32> -> vector<48x8xf32>
    %cst_29 = arith.constant dense<0.000000e+00> : vector<48x8xf32>
    %32 = tpu.matmul %27, %29, %cst_29 {dimension_numbers = #tpu.dot_dimension_numbers<[1], [0], [0], [1], [0, 0, 1, 1], [], []>} : vector<48x32xbf16>, vector<32x8xbf16>, vector<48x8xf32> -> vector<48x8xf32>
    %33 = arith.truncf %32 : vector<48x8xf32> to vector<48x8xbf16>
    %cst_30 = arith.constant dense<0.000000e+00> : vector<48x8xf32>
    %34 = tpu.matmul %0, %33, %cst_30 {dimension_numbers = #tpu.dot_dimension_numbers<[1], [0], [0], [1], [0, 0, 1, 1], [], []>} : vector<48x48xbf16>, vector<48x8xbf16>, vector<48x8xf32> -> vector<48x8xf32>
    %35 = arith.addf %31, %34 : vector<48x8xf32>
    %36 = vector.broadcast %30 : vector<1x8xf32> to vector<48x8xf32>
    %37 = arith.addf %35, %36 : vector<48x8xf32>
    %c0_31 = arith.constant 0 : index
    %c0_32 = arith.constant 0 : index
    %38 = vector.load %arg12[%c0_31, %c0_32] : memref<48x8xf32, #tpu.memory_space<vmem>>, vector<48x8xf32>
    tpu.vector_store %arg12[%c0_31, %c0_32], %37 {strides = array<i32>} : memref<48x8xf32, #tpu.memory_space<vmem>>, vector<48x8xf32>,
    return
  }
  func.func @transform_0(%arg0: i32) -> (i32, i32) {
    %c0_i32 = arith.constant 0 : i32
    %c0_i32_0 = arith.constant 0 : i32
    %c0_i32_1 = arith.constant 0 : i32
    return %c0_i32, %c0_i32_0 : i32, i32
  }
  func.func @transform_1(%arg0: i32) -> (i32, i32) {
    %c0_i32 = arith.constant 0 : i32
    %c0_i32_0 = arith.constant 0 : i32
    %c0_i32_1 = arith.constant 0 : i32
    return %c0_i32, %c0_i32_0 : i32, i32
  }
  func.func @transform_2(%arg0: i32) -> (i32, i32) {
    %c0_i32 = arith.constant 0 : i32
    %c0_i32_0 = arith.constant 0 : i32
    %c0_i32_1 = arith.constant 0 : i32
    return %c0_i32, %c0_i32_0 : i32, i32
  }
  func.func @transform_3(%arg0: i32) -> (i32, i32) {
    %c0_i32 = arith.constant 0 : i32
    %c0_i32_0 = arith.constant 0 : i32
    %c0_i32_1 = arith.constant 0 : i32
    return %c0_i32, %c0_i32_0 : i32, i32
  }
  func.func @transform_4(%arg0: i32) -> (i32, i32) {
    %c0_i32 = arith.constant 0 : i32
    %c0_i32_0 = arith.constant 0 : i32
    %c0_i32_1 = arith.constant 0 : i32
    return %c0_i32, %c0_i32_0 : i32, i32
  }
  func.func @transform_5(%arg0: i32) -> (i32, i32) {
    %c0_i32 = arith.constant 0 : i32
    %c0_i32_0 = arith.constant 0 : i32
    %c0_i32_1 = arith.constant 0 : i32
    return %c0_i32, %c0_i32_0 : i32, i32
  }
  func.func @transform_6(%arg0: i32) -> (i32, i32) {
    %c0_i32 = arith.constant 0 : i32
    %c0_i32_0 = arith.constant 0 : i32
    %c0_i32_1 = arith.constant 0 : i32
    return %c0_i32, %c0_i32_0 : i32, i32
  }
  func.func @transform_7(%arg0: i32) -> (i32, i32) {
    %c0_i32 = arith.constant 0 : i32
    %c0_i32_0 = arith.constant 0 : i32
    %c0_i32_1 = arith.constant 0 : i32
    return %c0_i32, %c0_i32_0 : i32, i32
  }
  func.func @transform_8(%arg0: i32) -> (i32, i32) {
    %c0_i32 = arith.constant 0 : i32
    %c0_i32_0 = arith.constant 0 : i32
    %c0_i32_1 = arith.constant 0 : i32
    return %c0_i32, %c0_i32_0 : i32, i32
  }
  func.func @transform_9(%arg0: i32) -> (i32, i32) {
    %c0_i32 = arith.constant 0 : i32
    %c0_i32_0 = arith.constant 0 : i32
    %c0_i32_1 = arith.constant 0 : i32
    return %c0_i32, %c0_i32_0 : i32, i32
  }
  func.func @transform_10(%arg0: i32) -> (i32, i32) {
    %c0_i32 = arith.constant 0 : i32
    %c0_i32_0 = arith.constant 0 : i32
    %c0_i32_1 = arith.constant 0 : i32
    return %c0_i32, %c0_i32_0 : i32, i32
  }
  func.func @transform_11(%arg0: i32) -> (i32, i32) {
    %c0_i32 = arith.constant 0 : i32
    %c0_i32_0 = arith.constant 0 : i32
    %c0_i32_1 = arith.constant 0 : i32
    return %c0_i32, %c0_i32_0 : i32, i32
  }
}

</mosaic_0001>

<llo_original>
// kernel: gnn_forward.1
$region0: #{gnn_forward.1}
  #allocation0 [shape = 'u32[]', space=smem, size = 0x4, offset = 0x4, fixed_abs, tag = 'smem constant byte address 0x4 - core index']
  #allocation1 [shape = 'u32[144,128]{1,0:T(1,128)}', space=vmem, size = 0x12000, scoped, tag = 'internal scratch']
  %s0 = inlined_call_operand.vmem [shape: bf16[48,48], index: 0, kind: input, shape index: {}]
  %s1 = inlined_call_operand.vmem [shape: bf16[48,4], index: 1, kind: input, shape index: {}]
  %s2 = inlined_call_operand.vmem [shape: bf16[4,32], index: 2, kind: input, shape index: {}]
  %s3 = inlined_call_operand.vmem [shape: bf16[4,32], index: 3, kind: input, shape index: {}]
  %s4 = inlined_call_operand.vmem [shape: f32[1,32], index: 4, kind: input, shape index: {}]
  %s5 = inlined_call_operand.vmem [shape: bf16[32,32], index: 5, kind: input, shape index: {}]
  %s6 = inlined_call_operand.vmem [shape: bf16[32,32], index: 6, kind: input, shape index: {}]
  %s7 = inlined_call_operand.vmem [shape: f32[1,32], index: 7, kind: input, shape index: {}]
  %s8 = inlined_call_operand.vmem [shape: bf16[32,8], index: 8, kind: input, shape index: {}]
  %s9 = inlined_call_operand.vmem [shape: bf16[32,8], index: 9, kind: input, shape index: {}]
  %s10 = inlined_call_operand.vmem [shape: f32[1,8], index: 10, kind: input, shape index: {}]
  %s11 = inlined_call_operand.vmem [shape: f32[48,8], index: 11, kind: output, shape index: {}]
  %s12 = sld [smem:[#allocation0]]
  $region54: #{gnn_forward.1} parent=0
    _
  %s14 = ssub.s32 1, %s12
  %s15 = scalar_select 0, %s14, %s12
  // Predicated region
  $region2: #{gnn_forward.1} parent=0 // pred_check
    _
  $region3: #{gnn_forward.1} parent=0 // pred_check_branch
    %17 = sbr.rel (0) target = $region5
  $region4: #{gnn_forward.1} parent=0 // pred_region
    _
  $region5: #{gnn_forward.1} parent=0 // pred_fallthru
    _
  // Predicated region
  $region6: #{gnn_forward.1} parent=0 // pred_check
    _
  $region7: #{gnn_forward.1} parent=0 // pred_check_branch
    %19 = sbr.rel (0) target = $region9
  $region8: #{gnn_forward.1} parent=0 // pred_region
    _
  $region9: #{gnn_forward.1} parent=0 // pred_fallthru
    _
  // Predicated region
  $region10: #{gnn_forward.1} parent=0 // pred_check
    _
  $region11: #{gnn_forward.1} parent=0 // pred_check_branch
    %21 = sbr.rel (0) target = $region13
  $region12: #{gnn_forward.1} parent=0 // pred_region
    _
  $region13: #{gnn_forward.1} parent=0 // pred_fallthru
    _
  // Predicated region
  $region14: #{gnn_forward.1} parent=0 // pred_check
    _
  $region15: #{gnn_forward.1} parent=0 // pred_check_branch
    %23 = sbr.rel (0) target = $region17
  $region16: #{gnn_forward.1} parent=0 // pred_region
    _
  $region17: #{gnn_forward.1} parent=0 // pred_fallthru
    _
  // Predicated region
  $region18: #{gnn_forward.1} parent=0 // pred_check
    _
  $region19: #{gnn_forward.1} parent=0 // pred_check_branch
    %25 = sbr.rel (0) target = $region21
  $region20: #{gnn_forward.1} parent=0 // pred_region
    _
  $region21: #{gnn_forward.1} parent=0 // pred_fallthru
    _
  // Predicated region
  $region22: #{gnn_forward.1} parent=0 // pred_check
    _
  $region23: #{gnn_forward.1} parent=0 // pred_check_branch
    %27 = sbr.rel (0) target = $region25
  $region24: #{gnn_forward.1} parent=0 // pred_region
    _
  $region25: #{gnn_forward.1} parent=0 // pred_fallthru
    _
  // Predicated region
  $region26: #{gnn_forward.1} parent=0 // pred_check
    _
  $region27: #{gnn_forward.1} parent=0 // pred_check_branch
    %29 = sbr.rel (0) target = $region29
  $region28: #{gnn_forward.1} parent=0 // pred_region
    _
  $region29: #{gnn_forward.1} parent=0 // pred_fallthru
    _
  // Predicated region
  $region30: #{gnn_forward.1} parent=0 // pred_check
    _
  $region31: #{gnn_forward.1} parent=0 // pred_check_branch
    %31 = sbr.rel (0) target = $region33
  $region32: #{gnn_forward.1} parent=0 // pred_region
    _
  $region33: #{gnn_forward.1} parent=0 // pred_fallthru
    _
  // Predicated region
  $region34: #{gnn_forward.1} parent=0 // pred_check
    _
  $region35: #{gnn_forward.1} parent=0 // pred_check_branch
    %33 = sbr.rel (0) target = $region37
  $region36: #{gnn_forward.1} parent=0 // pred_region
    _
  $region37: #{gnn_forward.1} parent=0 // pred_fallthru
    _
  // Predicated region
  $region38: #{gnn_forward.1} parent=0 // pred_check
    _
  $region39: #{gnn_forward.1} parent=0 // pred_check_branch
    %35 = sbr.rel (0) target = $region41
  $region40: #{gnn_forward.1} parent=0 // pred_region
    _
  $region41: #{gnn_forward.1} parent=0 // pred_fallthru
    _
  // Predicated region
  $region42: #{gnn_forward.1} parent=0 // pred_check
    _
  $region43: #{gnn_forward.1} parent=0 // pred_check_branch
    %37 = sbr.rel (0) target = $region45
  $region44: #{gnn_forward.1} parent=0 // pred_region
    _
  $region45: #{gnn_forward.1} parent=0 // pred_fallthru
    _
  %v39 = vld [vmem:[%s0] sm:$0xf]
  %v40 = vld [vmem:[%s0 + $0x4] sm:$0xf]
  %v41 = vld [vmem:[%s0 + $0x8] sm:$0xf]
  %v42 = vld [vmem:[%s0 + $0xc] sm:$0xf]
  %v43 = vld [vmem:[%s0 + $0x10] sm:$0xf]
  %v44 = vld [vmem:[%s0 + $0x14] sm:$0xf]
  %v45 = vld [vmem:[%s1] sm:$0xf]
  %v46 = vld [vmem:[%s1 + $0x4] sm:$0xf]
  %v47 = vld [vmem:[%s1 + $0x8] sm:$0xf]
  %v48 = vld [vmem:[%s1 + $0xc] sm:$0xf]
  %v49 = vld [vmem:[%s1 + $0x10] sm:$0xf]
  %v50 = vld [vmem:[%s1 + $0x14] sm:$0xf]
  %v51 = vld [vmem:[%s2] sm:$0x3]
  %v52 = vld [vmem:[%s3] sm:$0x3]
  %v53 = vld [vmem:[%s4] sm:$0x1]
  %v60 = vunpack.c.l.b16 %v39
  %v61 = vunpack.c.l.b16 %v40
  %v62 = vunpack.c.l.b16 %v41
  %v63 = vunpack.c.l.b16 %v42
  %v64 = vunpack.c.l.b16 %v43
  %v65 = vunpack.c.l.b16 %v44
  %v66 = vpack.c.b16 %v61, %v60
  %v67 = vpack.c.b16 %v63, %v62
  %v68 = vpack.c.b16 %v65, %v64
  %v75 = vunpack.c.l.b16 %v45
  %v76 = vunpack.c.l.b16 %v46
  %v77 = vunpack.c.l.b16 %v47
  %v78 = vunpack.c.l.b16 %v48
  %v79 = vunpack.c.l.b16 %v49
  %v80 = vunpack.c.l.b16 %v50
  %v81 = vpack.c.b16 %v76, %v75
  %v82 = vpack.c.b16 %v78, %v77
  %v83 = vpack.c.b16 %v80, %v79
  %vm87 = vcmask 392192
  %v89 = vsel %vm87, %v66, 0
  %v92 = vsel %vm87, %v67, 0
  %v95 = vsel %vm87, %v68, 0
  %97 = vmatprep.subr.bf16.mxu0 0
  %98 = vmatpush1.bf16.msra.mxu0 %v81
  %99 = vmatprep.subr.bf16.mxu0 0
  %100 = vmatpush1.bf16.msra.mxu0 %v82
  %101 = vmatprep.subr.bf16.mxu0 0
  %102 = vmatpush1.bf16.msra.mxu0 %v83
  %103 = vmatprep.subr.bf16.mxu0 0
  %104 = vmatpush1.bf16.msra.mxu0 0
  %105 = vmatprep.subr.bf16.mxu0 0
  %106 = vmatpush1.bf16.msra.mxu0 0
  %107 = vmatprep.subr.bf16.mxu0 0
  %108 = vmatpush1.bf16.msra.mxu0 0
  %109 = vmatprep.subr.bf16.mxu0 0
  %110 = vmatpush1.bf16.msra.mxu0 0
  %111 = vmatprep.subr.bf16.mxu0 0
  %112 = vmatpush1.bf16.msra.mxu0 0
  %113 = vmatprep.subr.bf16.mxu0 0
  %114 = vmatpush1.bf16.msra.mxu0 0
  %115 = vmatprep.subr.bf16.mxu0 0
  %116 = vmatpush1.bf16.msra.mxu0 0
  %117 = vmatprep.subr.bf16.mxu0 0
  %118 = vmatpush1.bf16.msra.mxu0 0
  %119 = vmatprep.subr.bf16.mxu0 0
  %120 = vmatpush1.bf16.msra.mxu0 0
  %121 = vmatprep.subr.bf16.mxu0 0
  %122 = vmatpush1.bf16.msra.mxu0 0
  %123 = vmatprep.subr.bf16.mxu0 0
  %124 = vmatpush1.bf16.msra.mxu0 0
  %125 = vmatprep.subr.bf16.mxu0 0
  %126 = vmatpush1.bf16.msra.mxu0 0
  %127 = vmatprep.subr.bf16.mxu0 0
  %128 = vmatpush1.bf16.msra.mxu0 0
  %129 = vmatprep.mubr.bf16.mxu0 0
  %130 = vmatmul.mubr.bf16.gmra.mrb[0].mxu0 %v89
  %v131 = vpop.f32.mrb[0].mxu0
  %v132 = vadd.f32 0.0, %v131
  %v133 = vpop.f32.mrb[0].mxu0
  %v134 = vpop.f32.mrb[0].mxu0
  %v135 = vadd.f32 0.0, %v134
  %v136 = vpop.f32.mrb[0].mxu0
  %137 = vmatprep.mubr.bf16.mxu0 0
  %138 = vmatmul.mubr.bf16.gmra.mrb[0].mxu0 %v92
  %v139 = vpop.f32.mrb[0].mxu0
  %v140 = vadd.f32 0.0, %v139
  %v141 = vpop.f32.mrb[0].mxu0
  %v142 = vpop.f32.mrb[0].mxu0
  %v143 = vadd.f32 0.0, %v142
  %v144 = vpop.f32.mrb[0].mxu0
  %145 = vmatprep.mubr.bf16.mxu0 0
  %146 = vmatmul.mubr.bf16.gmra.mrb[0].mxu0 %v95
  %v147 = vpop.f32.mrb[0].mxu0
  %v148 = vadd.f32 0.0, %v147
  %v149 = vpop.f32.mrb[0].mxu0
  %v150 = vpop.f32.mrb[0].mxu0
  %v151 = vadd.f32 0.0, %v150
  %v152 = vpop.f32.mrb[0].mxu0
  %153 = vdwg.mxu0
  %v154 = vpack.c.bf16 %v135, %v132
  %v155 = vpack.c.bf16 %v143, %v140
  %v156 = vpack.c.bf16 %v151, %v148
  %vm157 = vcmask 31744
  %v159 = vsel %vm157, %v154, 0
  %v162 = vsel %vm157, %v155, 0
  %v165 = vsel %vm157, %v156, 0
  %vm167 = vcmask 1041408
  %v169 = vsel %vm167, %v52, 0
  %171 = vmatprep.subr.bf16.mxu0 0
  %172 = vmatpush1.bf16.msra.mxu0 %v169
  %173 = vmatprep.subr.bf16.mxu0 0
  %174 = vmatpush1.bf16.msra.mxu0 0
  %175 = vmatprep.subr.bf16.mxu0 0
  %176 = vmatpush1.bf16.msra.mxu0 0
  %177 = vmatprep.subr.bf16.mxu0 0
  %178 = vmatpush1.bf16.msra.mxu0 0
  %179 = vmatprep.subr.bf16.mxu0 0
  %180 = vmatpush1.bf16.msra.mxu0 0
  %181 = vmatprep.subr.bf16.mxu0 0
  %182 = vmatpush1.bf16.msra.mxu0 0
  %183 = vmatprep.subr.bf16.mxu0 0
  %184 = vmatpush1.bf16.msra.mxu0 0
  %185 = vmatprep.subr.bf16.mxu0 0
  %186 = vmatpush1.bf16.msra.mxu0 0
  %187 = vmatprep.subr.bf16.mxu0 0
  %188 = vmatpush1.bf16.msra.mxu0 0
  %189 = vmatprep.subr.bf16.mxu0 0
  %190 = vmatpush1.bf16.msra.mxu0 0
  %191 = vmatprep.subr.bf16.mxu0 0
  %192 = vmatpush1.bf16.msra.mxu0 0
  %193 = vmatprep.subr.bf16.mxu0 0
  %194 = vmatpush1.bf16.msra.mxu0 0
  %195 = vmatprep.subr.bf16.mxu0 0
  %196 = vmatpush1.bf16.msra.mxu0 0
  %197 = vmatprep.subr.bf16.mxu0 0
  %198 = vmatpush1.bf16.msra.mxu0 0
  %199 = vmatprep.subr.bf16.mxu0 0
  %200 = vmatpush1.bf16.msra.mxu0 0
  %201 = vmatprep.subr.bf16.mxu0 0
  %202 = vmatpush1.bf16.msra.mxu0 0
  %203 = vmatprep.mubr.bf16.mxu0 0
  %204 = vmatmul.mubr.bf16.gmra.mrb[0].mxu0 %v159
  %v205 = vpop.f32.mrb[0].mxu0
  %v206 = vadd.f32 0.0, %v205
  %v207 = vpop.f32.mrb[0].mxu0
  %v208 = vpop.f32.mrb[0].mxu0
  %v209 = vadd.f32 0.0, %v208
  %v210 = vpop.f32.mrb[0].mxu0
  %211 = vmatprep.mubr.bf16.mxu0 0
  %212 = vmatmul.mubr.bf16.gmra.mrb[0].mxu0 %v162
  %v213 = vpop.f32.mrb[0].mxu0
  %v214 = vadd.f32 0.0, %v213
  %v215 = vpop.f32.mrb[0].mxu0
  %v216 = vpop.f32.mrb[0].mxu0
  %v217 = vadd.f32 0.0, %v216
  %v218 = vpop.f32.mrb[0].mxu0
  %219 = vmatprep.mubr.bf16.mxu0 0
  %220 = vmatmul.mubr.bf16.gmra.mrb[0].mxu0 %v165
  %v221 = vpop.f32.mrb[0].mxu0
  %v222 = vadd.f32 0.0, %v221
  %v223 = vpop.f32.mrb[0].mxu0
  %v224 = vpop.f32.mrb[0].mxu0
  %v225 = vadd.f32 0.0, %v224
  %v226 = vpop.f32.mrb[0].mxu0
  %227 = vdwg.mxu0
  %v229 = vsel %vm157, %v81, 0
  %v232 = vsel %vm157, %v82, 0
  %v235 = vsel %vm157, %v83, 0
  %v238 = vsel %vm167, %v51, 0
  %240 = vmatprep.subr.bf16.mxu0 0
  %241 = vmatpush1.bf16.msra.mxu0 %v238
  %242 = vmatprep.subr.bf16.mxu0 0
  %243 = vmatpush1.bf16.msra.mxu0 0
  %244 = vmatprep.subr.bf16.mxu0 0
  %245 = vmatpush1.bf16.msra.mxu0 0
  %246 = vmatprep.subr.bf16.mxu0 0
  %247 = vmatpush1.bf16.msra.mxu0 0
  %248 = vmatprep.subr.bf16.mxu0 0
  %249 = vmatpush1.bf16.msra.mxu0 0
  %250 = vmatprep.subr.bf16.mxu0 0
  %251 = vmatpush1.bf16.msra.mxu0 0
  %252 = vmatprep.subr.bf16.mxu0 0
  %253 = vmatpush1.bf16.msra.mxu0 0
  %254 = vmatprep.subr.bf16.mxu0 0
  %255 = vmatpush1.bf16.msra.mxu0 0
  %256 = vmatprep.subr.bf16.mxu0 0
  %257 = vmatpush1.bf16.msra.mxu0 0
  %258 = vmatprep.subr.bf16.mxu0 0
  %259 = vmatpush1.bf16.msra.mxu0 0
  %260 = vmatprep.subr.bf16.mxu0 0
  %261 = vmatpush1.bf16.msra.mxu0 0
  %262 = vmatprep.subr.bf16.mxu0 0
  %263 = vmatpush1.bf16.msra.mxu0 0
  %264 = vmatprep.subr.bf16.mxu0 0
  %265 = vmatpush1.bf16.msra.mxu0 0
  %266 = vmatprep.subr.bf16.mxu0 0
  %267 = vmatpush1.bf16.msra.mxu0 0
  %268 = vmatprep.subr.bf16.mxu0 0
  %269 = vmatpush1.bf16.msra.mxu0 0
  %270 = vmatprep.subr.bf16.mxu0 0
  %271 = vmatpush1.bf16.msra.mxu0 0
  %272 = vmatprep.mubr.bf16.mxu0 0
  %273 = vmatmul.mubr.bf16.gmra.mrb[0].mxu0 %v229
  %v274 = vpop.f32.mrb[0].mxu0
  %v275 = vadd.f32 %v206, %v274
  %v276 = vpop.f32.mrb[0].mxu0
  %v277 = vpop.f32.mrb[0].mxu0
  %v278 = vadd.f32 %v209, %v277
  %v279 = vpop.f32.mrb[0].mxu0
  %280 = vmatprep.mubr.bf16.mxu0 0
  %281 = vmatmul.mubr.bf16.gmra.mrb[0].mxu0 %v232
  %v282 = vpop.f32.mrb[0].mxu0
  %v283 = vadd.f32 %v214, %v282
  %v284 = vpop.f32.mrb[0].mxu0
  %v285 = vpop.f32.mrb[0].mxu0
  %v286 = vadd.f32 %v217, %v285
  %v287 = vpop.f32.mrb[0].mxu0
  %288 = vmatprep.mubr.bf16.mxu0 0
  %289 = vmatmul.mubr.bf16.gmra.mrb[0].mxu0 %v235
  %v290 = vpop.f32.mrb[0].mxu0
  %v291 = vadd.f32 %v222, %v290
  %v292 = vpop.f32.mrb[0].mxu0
  %v293 = vpop.f32.mrb[0].mxu0
  %v294 = vadd.f32 %v225, %v293
  %v295 = vpop.f32.mrb[0].mxu0
  %296 = vdwg.mxu0
  %v298 = vlaneseq
  %v299 = vshrl.u32 %v298, 7
  %v300 = vsub.s32 0, %v299
  %v301 = vrot.slane %v53, %v300
  %v303 = vadd.f32 %v275, %v301
  %v304 = vadd.f32 %v278, %v301
  %v305 = vadd.f32 %v283, %v301
  %v306 = vadd.f32 %v286, %v301
  %v307 = vadd.f32 %v291, %v301
  %v308 = vadd.f32 %v294, %v301
  %v309 = vmax.f32 %v303, 0.0
  %v310 = vmax.f32 %v304, 0.0
  %v311 = vmax.f32 %v305, 0.0
  %v312 = vmax.f32 %v306, 0.0
  %v313 = vmax.f32 %v307, 0.0
  %v314 = vmax.f32 %v308, 0.0
  %v315 = vpack.c.bf16 %v310, %v309
  %v316 = vpack.c.bf16 %v312, %v311
  %v317 = vpack.c.bf16 %v314, %v313
  %v318 = vld [vmem:[%s5] sm:$0xf]
  %v319 = vld [vmem:[%s5 + $0x4] sm:$0xf]
  %v320 = vld [vmem:[%s5 + $0x8] sm:$0xf]
  %v321 = vld [vmem:[%s5 + $0xc] sm:$0xf]
  %v322 = vld [vmem:[%s6] sm:$0xf]
  %v323 = vld [vmem:[%s6 + $0x4] sm:$0xf]
  %v324 = vld [vmem:[%s6 + $0x8] sm:$0xf]
  %v325 = vld [vmem:[%s6 + $0xc] sm:$0xf]
  %v326 = vld [vmem:[%s7] sm:$0x1]
  %327 = vmatprep.subr.bf16.mxu0 0
  %328 = vmatpush1.bf16.msra.mxu0 %v315
  %329 = vmatprep.subr.bf16.mxu0 0
  %330 = vmatpush1.bf16.msra.mxu0 %v316
  %331 = vmatprep.subr.bf16.mxu0 0
  %332 = vmatpush1.bf16.msra.mxu0 %v317
  %333 = vmatprep.subr.bf16.mxu0 0
  %334 = vmatpush1.bf16.msra.mxu0 0
  %335 = vmatprep.subr.bf16.mxu0 0
  %336 = vmatpush1.bf16.msra.mxu0 0
  %337 = vmatprep.subr.bf16.mxu0 0
  %338 = vmatpush1.bf16.msra.mxu0 0
  %339 = vmatprep.subr.bf16.mxu0 0
  %340 = vmatpush1.bf16.msra.mxu0 0
  %341 = vmatprep.subr.bf16.mxu0 0
  %342 = vmatpush1.bf16.msra.mxu0 0
  %343 = vmatprep.subr.bf16.mxu0 0
  %344 = vmatpush1.bf16.msra.mxu0 0
  %345 = vmatprep.subr.bf16.mxu0 0
  %346 = vmatpush1.bf16.msra.mxu0 0
  %347 = vmatprep.subr.bf16.mxu0 0
  %348 = vmatpush1.bf16.msra.mxu0 0
  %349 = vmatprep.subr.bf16.mxu0 0
  %350 = vmatpush1.bf16.msra.mxu0 0
  %351 = vmatprep.subr.bf16.mxu0 0
  %352 = vmatpush1.bf16.msra.mxu0 0
  %353 = vmatprep.subr.bf16.mxu0 0
  %354 = vmatpush1.bf16.msra.mxu0 0
  %355 = vmatprep.subr.bf16.mxu0 0
  %356 = vmatpush1.bf16.msra.mxu0 0
  %357 = vmatprep.subr.bf16.mxu0 0
  %358 = vmatpush1.bf16.msra.mxu0 0
  %359 = vmatprep.mubr.bf16.mxu0 0
  %360 = vmatmul.mubr.bf16.gmra.mrb[0].mxu0 %v89
  %v361 = vpop.f32.mrb[0].mxu0
  %v362 = vadd.f32 0.0, %v361
  %v363 = vpop.f32.mrb[0].mxu0
  %v364 = vpop.f32.mrb[0].mxu0
  %v365 = vadd.f32 0.0, %v364
  %v366 = vpop.f32.mrb[0].mxu0
  %367 = vmatprep.mubr.bf16.mxu0 0
  %368 = vmatmul.mubr.bf16.gmra.mrb[0].mxu0 %v92
  %v369 = vpop.f32.mrb[0].mxu0
  %v370 = vadd.f32 0.0, %v369
  %v371 = vpop.f32.mrb[0].mxu0
  %v372 = vpop.f32.mrb[0].mxu0
  %v373 = vadd.f32 0.0, %v372
  %v374 = vpop.f32.mrb[0].mxu0
  %375 = vmatprep.mubr.bf16.mxu0 0
  %376 = vmatmul.mubr.bf16.gmra.mrb[0].mxu0 %v95
  %v377 = vpop.f32.mrb[0].mxu0
  %v378 = vadd.f32 0.0, %v377
  %v379 = vpop.f32.mrb[0].mxu0
  %v380 = vpop.f32.mrb[0].mxu0
  %v381 = vadd.f32 0.0, %v380
  %v382 = vpop.f32.mrb[0].mxu0
  %383 = vdwg.mxu0
  %v384 = vpack.c.bf16 %v365, %v362
  %v385 = vpack.c.bf16 %v373, %v370
  %v386 = vpack.c.bf16 %v381, %v378
  %v391 = vunpack.c.l.b16 %v322
  %v392 = vunpack.c.l.b16 %v323
  %v393 = vunpack.c.l.b16 %v324
  %v394 = vunpack.c.l.b16 %v325
  %v395 = vpack.c.b16 %v392, %v391
  %v396 = vpack.c.b16 %v394, %v393
  %vm399 = vcmask 261120
  %v401 = vsel %vm399, %v384, 0
  %v404 = vsel %vm399, %v385, 0
  %v407 = vsel %vm399, %v386, 0
  %409 = vmatprep.subr.bf16.mxu0 0
  %410 = vmatpush1.bf16.msra.mxu0 %v395
  %411 = vmatprep.subr.bf16.mxu0 0
  %412 = vmatpush1.bf16.msra.mxu0 %v396
  %413 = vmatprep.subr.bf16.mxu0 0
  %414 = vmatpush1.bf16.msra.mxu0 0
  %415 = vmatprep.subr.bf16.mxu0 0
  %416 = vmatpush1.bf16.msra.mxu0 0
  %417 = vmatprep.subr.bf16.mxu0 0
  %418 = vmatpush1.bf16.msra.mxu0 0
  %419 = vmatprep.subr.bf16.mxu0 0
  %420 = vmatpush1.bf16.msra.mxu0 0
  %421 = vmatprep.subr.bf16.mxu0 0
  %422 = vmatpush1.bf16.msra.mxu0 0
  %423 = vmatprep.subr.bf16.mxu0 0
  %424 = vmatpush1.bf16.msra.mxu0 0
  %425 = vmatprep.subr.bf16.mxu0 0
  %426 = vmatpush1.bf16.msra.mxu0 0
  %427 = vmatprep.subr.bf16.mxu0 0
  %428 = vmatpush1.bf16.msra.mxu0 0
  %429 = vmatprep.subr.bf16.mxu0 0
  %430 = vmatpush1.bf16.msra.mxu0 0
  %431 = vmatprep.subr.bf16.mxu0 0
  %432 = vmatpush1.bf16.msra.mxu0 0
  %433 = vmatprep.subr.bf16.mxu0 0
  %434 = vmatpush1.bf16.msra.mxu0 0
  %435 = vmatprep.subr.bf16.mxu0 0
  %436 = vmatpush1.bf16.msra.mxu0 0
  %437 = vmatprep.subr.bf16.mxu0 0
  %438 = vmatpush1.bf16.msra.mxu0 0
  %439 = vmatprep.subr.bf16.mxu0 0
  %440 = vmatpush1.bf16.msra.mxu0 0
  %441 = vmatprep.mubr.bf16.mxu0 0
  %442 = vmatmul.mubr.bf16.gmra.mrb[0].mxu0 %v401
  %v443 = vpop.f32.mrb[0].mxu0
  %v444 = vadd.f32 0.0, %v443
  %v445 = vpop.f32.mrb[0].mxu0
  %v446 = vpop.f32.mrb[0].mxu0
  %v447 = vadd.f32 0.0, %v446
  %v448 = vpop.f32.mrb[0].mxu0
  %449 = vmatprep.mubr.bf16.mxu0 0
  %450 = vmatmul.mubr.bf16.gmra.mrb[0].mxu0 %v404
  %v451 = vpop.f32.mrb[0].mxu0
  %v452 = vadd.f32 0.0, %v451
  %v453 = vpop.f32.mrb[0].mxu0
  %v454 = vpop.f32.mrb[0].mxu0
  %v455 = vadd.f32 0.0, %v454
  %v456 = vpop.f32.mrb[0].mxu0
  %457 = vmatprep.mubr.bf16.mxu0 0
  %458 = vmatmul.mubr.bf16.gmra.mrb[0].mxu0 %v407
  %v459 = vpop.f32.mrb[0].mxu0
  %v460 = vadd.f32 0.0, %v459
  %v461 = vpop.f32.mrb[0].mxu0
  %v462 = vpop.f32.mrb[0].mxu0
  %v463 = vadd.f32 0.0, %v462
  %v464 = vpop.f32.mrb[0].mxu0
  %465 = vdwg.mxu0
  %v470 = vunpack.c.l.b16 %v318
  %v471 = vunpack.c.l.b16 %v319
  %v472 = vunpack.c.l.b16 %v320
  %v473 = vunpack.c.l.b16 %v321
  %v474 = vpack.c.b16 %v471, %v470
  %v475 = vpack.c.b16 %v473, %v472
  %v479 = vsel %vm399, %v315, 0
  %v482 = vsel %vm399, %v316, 0
  %v485 = vsel %vm399, %v317, 0
  %487 = vmatprep.subr.bf16.mxu0 0
  %488 = vmatpush1.bf16.msra.mxu0 %v474
  %489 = vmatprep.subr.bf16.mxu0 0
  %490 = vmatpush1.bf16.msra.mxu0 %v475
  %491 = vmatprep.subr.bf16.mxu0 0
  %492 = vmatpush1.bf16.msra.mxu0 0
  %493 = vmatprep.subr.bf16.mxu0 0
  %494 = vmatpush1.bf16.msra.mxu0 0
  %495 = vmatprep.subr.bf16.mxu0 0
  %496 = vmatpush1.bf16.msra.mxu0 0
  %497 = vmatprep.subr.bf16.mxu0 0
  %498 = vmatpush1.bf16.msra.mxu0 0
  %499 = vmatprep.subr.bf16.mxu0 0
  %500 = vmatpush1.bf16.msra.mxu0 0
  %501 = vmatprep.subr.bf16.mxu0 0
  %502 = vmatpush1.bf16.msra.mxu0 0
  %503 = vmatprep.subr.bf16.mxu0 0
  %504 = vmatpush1.bf16.msra.mxu0 0
  %505 = vmatprep.subr.bf16.mxu0 0
  %506 = vmatpush1.bf16.msra.mxu0 0
  %507 = vmatprep.subr.bf16.mxu0 0
  %508 = vmatpush1.bf16.msra.mxu0 0
  %509 = vmatprep.subr.bf16.mxu0 0
  %510 = vmatpush1.bf16.msra.mxu0 0
  %511 = vmatprep.subr.bf16.mxu0 0
  %512 = vmatpush1.bf16.msra.mxu0 0
  %513 = vmatprep.subr.bf16.mxu0 0
  %514 = vmatpush1.bf16.msra.mxu0 0
  %515 = vmatprep.subr.bf16.mxu0 0
  %516 = vmatpush1.bf16.msra.mxu0 0
  %517 = vmatprep.subr.bf16.mxu0 0
  %518 = vmatpush1.bf16.msra.mxu0 0
  %519 = vmatprep.mubr.bf16.mxu0 0
  %520 = vmatmul.mubr.bf16.gmra.mrb[0].mxu0 %v479
  %v521 = vpop.f32.mrb[0].mxu0
  %v522 = vadd.f32 %v444, %v521
  %v523 = vpop.f32.mrb[0].mxu0
  %v524 = vpop.f32.mrb[0].mxu0
  %v525 = vadd.f32 %v447, %v524
  %v526 = vpop.f32.mrb[0].mxu0
  %527 = vmatprep.mubr.bf16.mxu0 0
  %528 = vmatmul.mubr.bf16.gmra.mrb[0].mxu0 %v482
  %v529 = vpop.f32.mrb[0].mxu0
  %v530 = vadd.f32 %v452, %v529
  %v531 = vpop.f32.mrb[0].mxu0
  %v532 = vpop.f32.mrb[0].mxu0
  %v533 = vadd.f32 %v455, %v532
  %v534 = vpop.f32.mrb[0].mxu0
  %535 = vmatprep.mubr.bf16.mxu0 0
  %536 = vmatmul.mubr.bf16.gmra.mrb[0].mxu0 %v485
  %v537 = vpop.f32.mrb[0].mxu0
  %v538 = vadd.f32 %v460, %v537
  %v539 = vpop.f32.mrb[0].mxu0
  %v540 = vpop.f32.mrb[0].mxu0
  %v541 = vadd.f32 %v463, %v540
  %v542 = vpop.f32.mrb[0].mxu0
  %543 = vdwg.mxu0
  %v545 = vlaneseq
  %v546 = vshrl.u32 %v545, 7
  %v547 = vsub.s32 0, %v546
  %v548 = vrot.slane %v326, %v547
  %v550 = vadd.f32 %v522, %v548
  %v551 = vadd.f32 %v525, %v548
  %v552 = vadd.f32 %v530, %v548
  %v553 = vadd.f32 %v533, %v548
  %v554 = vadd.f32 %v538, %v548
  %v555 = vadd.f32 %v541, %v548
  %v556 = vmax.f32 %v550, 0.0
  %v557 = vmax.f32 %v551, 0.0
  %v558 = vmax.f32 %v552, 0.0
  %v559 = vmax.f32 %v553, 0.0
  %v560 = vmax.f32 %v554, 0.0
  %v561 = vmax.f32 %v555, 0.0
  %v562 = vpack.c.bf16 %v557, %v556
  %v563 = vpack.c.bf16 %v559, %v558
  %v564 = vpack.c.bf16 %v561, %v560
  %v565 = vld [vmem:[%s8] sm:$0xf]
  %v566 = vld [vmem:[%s8 + $0x4] sm:$0xf]
  %v567 = vld [vmem:[%s8 + $0x8] sm:$0xf]
  %v568 = vld [vmem:[%s8 + $0xc] sm:$0xf]
  %v569 = vld [vmem:[%s9] sm:$0xf]
  %v570 = vld [vmem:[%s9 + $0x4] sm:$0xf]
  %v571 = vld [vmem:[%s9 + $0x8] sm:$0xf]
  %v572 = vld [vmem:[%s9 + $0xc] sm:$0xf]
  %v573 = vld [vmem:[%s10] sm:$0x1]
  %v578 = vunpack.c.l.b16 %v569
  %v579 = vunpack.c.l.b16 %v570
  %v580 = vunpack.c.l.b16 %v571
  %v581 = vunpack.c.l.b16 %v572
  %v582 = vpack.c.b16 %v579, %v578
  %v583 = vpack.c.b16 %v581, %v580
  %v587 = vsel %vm399, %v562, 0
  %v590 = vsel %vm399, %v563, 0
  %v593 = vsel %vm399, %v564, 0
  %595 = vmatprep.subr.bf16.mxu0 0
  %596 = vmatpush1.bf16.msra.mxu0 %v582
  %597 = vmatprep.subr.bf16.mxu0 0
  %598 = vmatpush1.bf16.msra.mxu0 %v583
  %599 = vmatprep.subr.bf16.mxu0 0
  %600 = vmatpush1.bf16.msra.mxu0 0
  %601 = vmatprep.subr.bf16.mxu0 0
  %602 = vmatpush1.bf16.msra.mxu0 0
  %603 = vmatprep.subr.bf16.mxu0 0
  %604 = vmatpush1.bf16.msra.mxu0 0
  %605 = vmatprep.subr.bf16.mxu0 0
  %606 = vmatpush1.bf16.msra.mxu0 0
  %607 = vmatprep.subr.bf16.mxu0 0
  %608 = vmatpush1.bf16.msra.mxu0 0
  %609 = vmatprep.subr.bf16.mxu0 0
  %610 = vmatpush1.bf16.msra.mxu0 0
  %611 = vmatprep.subr.bf16.mxu0 0
  %612 = vmatpush1.bf16.msra.mxu0 0
  %613 = vmatprep.subr.bf16.mxu0 0
  %614 = vmatpush1.bf16.msra.mxu0 0
  %615 = vmatprep.subr.bf16.mxu0 0
  %616 = vmatpush1.bf16.msra.mxu0 0
  %617 = vmatprep.subr.bf16.mxu0 0
  %618 = vmatpush1.bf16.msra.mxu0 0
  %619 = vmatprep.subr.bf16.mxu0 0
  %620 = vmatpush1.bf16.msra.mxu0 0
  %621 = vmatprep.subr.bf16.mxu0 0
  %622 = vmatpush1.bf16.msra.mxu0 0
  %623 = vmatprep.subr.bf16.mxu0 0
  %624 = vmatpush1.bf16.msra.mxu0 0
  %625 = vmatprep.subr.bf16.mxu0 0
  %626 = vmatpush1.bf16.msra.mxu0 0
  %627 = vmatprep.mubr.bf16.mxu0 0
  %628 = vmatmul.mubr.bf16.gmra.mrb[0].mxu0 %v587
  %v629 = vpop.f32.mrb[0].mxu0
  %v630 = vadd.f32 0.0, %v629
  %v631 = vpop.f32.mrb[0].mxu0
  %v632 = vpop.f32.mrb[0].mxu0
  %v633 = vadd.f32 0.0, %v632
  %v634 = vpop.f32.mrb[0].mxu0
  %635 = vmatprep.mubr.bf16.mxu0 0
  %636 = vmatmul.mubr.bf16.gmra.mrb[0].mxu0 %v590
  %v637 = vpop.f32.mrb[0].mxu0
  %v638 = vadd.f32 0.0, %v637
  %v639 = vpop.f32.mrb[0].mxu0
  %v640 = vpop.f32.mrb[0].mxu0
  %v641 = vadd.f32 0.0, %v640
  %v642 = vpop.f32.mrb[0].mxu0
  %643 = vmatprep.mubr.bf16.mxu0 0
  %644 = vmatmul.mubr.bf16.gmra.mrb[0].mxu0 %v593
  %v645 = vpop.f32.mrb[0].mxu0
  %v646 = vadd.f32 0.0, %v645
  %v647 = vpop.f32.mrb[0].mxu0
  %v648 = vpop.f32.mrb[0].mxu0
  %v649 = vadd.f32 0.0, %v648
  %v650 = vpop.f32.mrb[0].mxu0
  %651 = vdwg.mxu0
  %v652 = vpack.c.bf16 %v633, %v630
  %v653 = vpack.c.bf16 %v641, %v638
  %v654 = vpack.c.bf16 %v649, %v646
  %655 = vmatprep.subr.bf16.mxu0 0
  %656 = vmatpush1.bf16.msra.mxu0 %v652
  %657 = vmatprep.subr.bf16.mxu0 0
  %658 = vmatpush1.bf16.msra.mxu0 %v653
  %659 = vmatprep.subr.bf16.mxu0 0
  %660 = vmatpush1.bf16.msra.mxu0 %v654
  %661 = vmatprep.subr.bf16.mxu0 0
  %662 = vmatpush1.bf16.msra.mxu0 0
  %663 = vmatprep.subr.bf16.mxu0 0
  %664 = vmatpush1.bf16.msra.mxu0 0
  %665 = vmatprep.subr.bf16.mxu0 0
  %666 = vmatpush1.bf16.msra.mxu0 0
  %667 = vmatprep.subr.bf16.mxu0 0
  %668 = vmatpush1.bf16.msra.mxu0 0
  %669 = vmatprep.subr.bf16.mxu0 0
  %670 = vmatpush1.bf16.msra.mxu0 0
  %671 = vmatprep.subr.bf16.mxu0 0
  %672 = vmatpush1.bf16.msra.mxu0 0
  %673 = vmatprep.subr.bf16.mxu0 0
  %674 = vmatpush1.bf16.msra.mxu0 0
  %675 = vmatprep.subr.bf16.mxu0 0
  %676 = vmatpush1.bf16.msra.mxu0 0
  %677 = vmatprep.subr.bf16.mxu0 0
  %678 = vmatpush1.bf16.msra.mxu0 0
  %679 = vmatprep.subr.bf16.mxu0 0
  %680 = vmatpush1.bf16.msra.mxu0 0
  %681 = vmatprep.subr.bf16.mxu0 0
  %682 = vmatpush1.bf16.msra.mxu0 0
  %683 = vmatprep.subr.bf16.mxu0 0
  %684 = vmatpush1.bf16.msra.mxu0 0
  %685 = vmatprep.subr.bf16.mxu0 0
  %686 = vmatpush1.bf16.msra.mxu0 0
  %687 = vmatprep.mubr.bf16.mxu0 0
  %688 = vmatmul.mubr.bf16.gmra.mrb[0].mxu0 %v89
  %v689 = vpop.f32.mrb[0].mxu0
  %v690 = vadd.f32 0.0, %v689
  %v691 = vpop.f32.mrb[0].mxu0
  %v692 = vpop.f32.mrb[0].mxu0
  %v693 = vadd.f32 0.0, %v692
  %v694 = vpop.f32.mrb[0].mxu0
  %695 = vmatprep.mubr.bf16.mxu0 0
  %696 = vmatmul.mubr.bf16.gmra.mrb[0].mxu0 %v92
  %v697 = vpop.f32.mrb[0].mxu0
  %v698 = vadd.f32 0.0, %v697
  %v699 = vpop.f32.mrb[0].mxu0
  %v700 = vpop.f32.mrb[0].mxu0
  %v701 = vadd.f32 0.0, %v700
  %v702 = vpop.f32.mrb[0].mxu0
  %703 = vmatprep.mubr.bf16.mxu0 0
  %704 = vmatmul.mubr.bf16.gmra.mrb[0].mxu0 %v95
  %v705 = vpop.f32.mrb[0].mxu0
  %v706 = vadd.f32 0.0, %v705
  %v707 = vpop.f32.mrb[0].mxu0
  %v708 = vpop.f32.mrb[0].mxu0
  %v709 = vadd.f32 0.0, %v708
  %v710 = vpop.f32.mrb[0].mxu0
  %711 = vdwg.mxu0
  %v716 = vunpack.c.l.b16 %v565
  %v717 = vunpack.c.l.b16 %v566
  %v718 = vunpack.c.l.b16 %v567
  %v719 = vunpack.c.l.b16 %v568
  %v720 = vpack.c.b16 %v717, %v716
  %v721 = vpack.c.b16 %v719, %v718
  %724 = vmatprep.subr.bf16.mxu0 0
  %725 = vmatpush1.bf16.msra.mxu0 %v720
  %726 = vmatprep.subr.bf16.mxu0 0
  %727 = vmatpush1.bf16.msra.mxu0 %v721
  %728 = vmatprep.subr.bf16.mxu0 0
  %729 = vmatpush1.bf16.msra.mxu0 0
  %730 = vmatprep.subr.bf16.mxu0 0
  %731 = vmatpush1.bf16.msra.mxu0 0
  %732 = vmatprep.subr.bf16.mxu0 0
  %733 = vmatpush1.bf16.msra.mxu0 0
  %734 = vmatprep.subr.bf16.mxu0 0
  %735 = vmatpush1.bf16.msra.mxu0 0
  %736 = vmatprep.subr.bf16.mxu0 0
  %737 = vmatpush1.bf16.msra.mxu0 0
  %738 = vmatprep.subr.bf16.mxu0 0
  %739 = vmatpush1.bf16.msra.mxu0 0
  %740 = vmatprep.subr.bf16.mxu0 0
  %741 = vmatpush1.bf16.msra.mxu0 0
  %742 = vmatprep.subr.bf16.mxu0 0
  %743 = vmatpush1.bf16.msra.mxu0 0
  %744 = vmatprep.subr.bf16.mxu0 0
  %745 = vmatpush1.bf16.msra.mxu0 0
  %746 = vmatprep.subr.bf16.mxu0 0
  %747 = vmatpush1.bf16.msra.mxu0 0
  %748 = vmatprep.subr.bf16.mxu0 0
  %749 = vmatpush1.bf16.msra.mxu0 0
  %750 = vmatprep.subr.bf16.mxu0 0
  %751 = vmatpush1.bf16.msra.mxu0 0
  %752 = vmatprep.subr.bf16.mxu0 0
  %753 = vmatpush1.bf16.msra.mxu0 0
  %754 = vmatprep.subr.bf16.mxu0 0
  %755 = vmatpush1.bf16.msra.mxu0 0
  %756 = vmatprep.mubr.bf16.mxu0 0
  %757 = vmatmul.mubr.bf16.gmra.mrb[0].mxu0 %v587
  %v758 = vpop.f32.mrb[0].mxu0
  %v759 = vadd.f32 %v690, %v758
  %v760 = vpop.f32.mrb[0].mxu0
  %v761 = vpop.f32.mrb[0].mxu0
  %v762 = vadd.f32 %v693, %v761
  %v763 = vpop.f32.mrb[0].mxu0
  %764 = vmatprep.mubr.bf16.mxu0 0
  %765 = vmatmul.mubr.bf16.gmra.mrb[0].mxu0 %v590
  %v766 = vpop.f32.mrb[0].mxu0
  %v767 = vadd.f32 %v698, %v766
  %v768 = vpop.f32.mrb[0].mxu0
  %v769 = vpop.f32.mrb[0].mxu0
  %v770 = vadd.f32 %v701, %v769
  %v771 = vpop.f32.mrb[0].mxu0
  %772 = vmatprep.mubr.bf16.mxu0 0
  %773 = vmatmul.mubr.bf16.gmra.mrb[0].mxu0 %v593
  %v774 = vpop.f32.mrb[0].mxu0
  %v775 = vadd.f32 %v706, %v774
  %v776 = vpop.f32.mrb[0].mxu0
  %v777 = vpop.f32.mrb[0].mxu0
  %v778 = vadd.f32 %v709, %v777
  %v779 = vpop.f32.mrb[0].mxu0
  %780 = vdwg.mxu0
  %v782 = vlaneseq
  %v783 = vshrl.u32 %v782, 7
  %v784 = vsub.s32 0, %v783
  %v785 = vrot.slane %v573, %v784
  %v787 = vadd.f32 %v759, %v785
  %v788 = vadd.f32 %v762, %v785
  %v789 = vadd.f32 %v767, %v785
  %v790 = vadd.f32 %v770, %v785
  %v791 = vadd.f32 %v775, %v785
  %v792 = vadd.f32 %v778, %v785
  %vm793 = vcmask 64512
  %794 = vst.msk [vmem:[%s11] sm:$0xff] %vm793, %v787
  %795 = vst.msk [vmem:[%s11 + $0x8] sm:$0xff] %vm793, %v788
  %796 = vst.msk [vmem:[%s11 + $0x10] sm:$0xff] %vm793, %v789
  %797 = vst.msk [vmem:[%s11 + $0x18] sm:$0xff] %vm793, %v790
  %798 = vst.msk [vmem:[%s11 + $0x20] sm:$0xff] %vm793, %v791
  %799 = vst.msk [vmem:[%s11 + $0x28] sm:$0xff] %vm793, %v792
  // Predicated region
  $region46: #{gnn_forward.1} parent=0 // pred_check
    _
  $region47: #{gnn_forward.1} parent=0 // pred_check_branch
    %801 = sbr.rel (0) target = $region49
  $region48: #{gnn_forward.1} parent=0 // pred_region
    _
  $region49: #{gnn_forward.1} parent=0 // pred_fallthru
    _
  // Predicated region
  $region50: #{gnn_forward.1} parent=0 // pred_check
    _
  $region51: #{gnn_forward.1} parent=0 // pred_check_branch
    %803 = sbr.rel (0) target = $region53
  $region52: #{gnn_forward.1} parent=0 // pred_region
    _
  $region53: #{gnn_forward.1} parent=0 // pred_fallthru
    _

</llo_original>
